<compile_context>
chip_gen: v5e
topology: v5e:2x2
jax: 0.10.0
libtpu: 0.0.40
codegen_flags: <defaults>
</compile_context>

<pallas_src>
import functools

import jax
import jax.numpy as jnp
from jax.experimental import pallas as pl
from jax.experimental.pallas import tpu as pltpu


def _round_up(x, m):
    return (x + m - 1) // m * m


# ----------------------------- Pallas kernel --------------------------------

def fused_gnn_kernel(x_ref, a_ref, w_ref, scale_ref, shift_ref, o_ref,
                     h_ref, acc_ref, *, n_pad, tile, compute_dtype):
    """Grid = (layer, m_tile, k_tile).  Per step:
         acc[m] += A[m, k] @ H_layer[k]                    (MXU, f32 accumulate)
       and at the last k tile of each (layer, m) group:
         out = (acc @ W_layer) * scale + shift ; ReLU      (MXU + fused epilogue)
       writing `out` into the other half of the ping-pong activation scratch."""
    l = pl.program_id(0)
    m = pl.program_id(1)
    k = pl.program_id(2)
    n_layers = pl.num_programs(0)
    nk = pl.num_programs(2)

    # Stage padded input features into activation slot 0 (runs once).
    @pl.when((l == 0) & (m == 0) & (k == 0))
    def _():
        h_ref[0:n_pad, :] = x_ref[...]

    # Zero the aggregation accumulator at the start of each (layer, m) group.
    @pl.when(k == 0)
    def _():
        acc_ref[...] = jnp.zeros_like(acc_ref)

    # acc += A_hat[m_tile, k_tile] @ H_l[k_tile, :]
    src_row = pl.multiple_of((l % 2) * n_pad + k * tile, tile)
    h_in = h_ref[pl.ds(src_row, tile), :]
    acc_ref[...] += jnp.dot(a_ref[...], h_in, preferred_element_type=jnp.float32)

    # Finalize this row tile: feature transform + folded bias/BN + ReLU.
    @pl.when(k == nk - 1)
    def _():
        s = acc_ref[...].astype(compute_dtype)
        out = jnp.dot(s, w_ref[0], preferred_element_type=jnp.float32)
        out = out * scale_ref[0] + shift_ref[0]
        # ReLU on every layer except the last (scalar threshold -> cheap max).
        lo = jnp.where(l < n_layers - 1, 0.0, -jnp.inf).astype(jnp.float32)
        out = jnp.maximum(out, lo)
        dst_row = pl.multiple_of(((l + 1) % 2) * n_pad + m * tile, tile)
        h_ref[pl.ds(dst_row, tile), :] = out.astype(compute_dtype)
        o_ref[...] = out


# ----------------------------- Host wrapper ----------------------------------

def build_normalized_adjacency(edge_index, num_nodes):
    """Dense A_hat = D^{-1/2} (A + I) D^{-1/2} (PyG GCNConv default)."""
    src = edge_index[0]
    dst = edge_index[1]
    loops = jnp.arange(num_nodes, dtype=edge_index.dtype)
    src = jnp.concatenate([src, loops])
    dst = jnp.concatenate([dst, loops])
    a = jnp.zeros((num_nodes, num_nodes), jnp.float32).at[dst, src].add(1.0)
    deg = a.sum(axis=1)
    dinv = jnp.where(deg > 0, 1.0 / jnp.sqrt(deg), 0.0)
    return dinv[:, None] * a * dinv[None, :]


def gnn_forward(x, edge_index, params, *, compute_dtype=jnp.bfloat16):
    n = x.shape[0]
    n_layers = len(params)
    out_dim = params[-1][0].shape[1]

    # Lane-pad every feature dim to a multiple of 128 (zero-filled -> identical
    # results after slicing); node-pad N to the M/K tile size.
    fdim = _round_up(max([x.shape[1]] + [w.shape[1] for w, *_ in params]), 128)
    tile = min(512, _round_up(n, 128))
    n_pad = _round_up(n, tile)

    a_hat = build_normalized_adjacency(edge_index, n)
    a_pad = jnp.zeros((n_pad, n_pad), compute_dtype).at[:n, :n].set(
        a_hat.astype(compute_dtype))
    x_pad = jnp.zeros((n_pad, fdim), compute_dtype).at[:n, :x.shape[1]].set(
        x.astype(compute_dtype))

    w_stack = jnp.zeros((n_layers, fdim, fdim), compute_dtype)
    scale_stack = jnp.ones((n_layers, 1, fdim), jnp.float32)
    shift_stack = jnp.zeros((n_layers, 1, fdim), jnp.float32)
    for i, (w, b, scale, shift) in enumerate(params):
        fi, fo = w.shape
        w_stack = w_stack.at[i, :fi, :fo].set(w.astype(compute_dtype))
        scale_stack = scale_stack.at[i, :, :fo].set(scale)
        # Fold the GCN bias into the eval-mode BN affine: (h+b)*s + t = h*s + (b*s+t)
        shift_stack = shift_stack.at[i, :, :fo].set(b * scale + shift)

    grid = (n_layers, n_pad // tile, n_pad // tile)

    cbytes = jnp.dtype(compute_dtype).itemsize
    vmem_est = (2 * n_pad * fdim * cbytes          # activation ping-pong scratch
                + tile * fdim * 4                  # f32 accumulator
                + 2 * n_pad * fdim * cbytes        # X (double-buffered)
                + 2 * tile * tile * cbytes         # A_hat tiles (double-buffered)
                + 2 * fdim * fdim * cbytes         # W tiles
                + 2 * tile * fdim * 4              # output tiles
                + (2 << 20))
    vmem_limit = int(min(64 * 1024 * 1024, max(32 * 1024 * 1024, 2 * vmem_est)))

    kernel = functools.partial(fused_gnn_kernel, n_pad=n_pad, tile=tile,
                               compute_dtype=compute_dtype)

    out_pad = pl.pallas_call(
        kernel,
        out_shape=jax.ShapeDtypeStruct((n_pad, fdim), jnp.float32),
        grid_spec=pltpu.PrefetchScalarGridSpec(
            num_scalar_prefetch=0,
            grid=grid,
            in_specs=[
                pl.BlockSpec((n_pad, fdim), lambda l, m, k: (0, 0)),       # X (resident)
                pl.BlockSpec((tile, tile), lambda l, m, k: (m, k)),        # A_hat tile
                pl.BlockSpec((1, fdim, fdim), lambda l, m, k: (l, 0, 0)),  # W_l
                pl.BlockSpec((1, 1, fdim), lambda l, m, k: (l, 0, 0)),     # scale_l
                pl.BlockSpec((1, 1, fdim), lambda l, m, k: (l, 0, 0)),     # shift_l
            ],
            out_specs=pl.BlockSpec((tile, fdim), lambda l, m, k: (m, 0)),
            scratch_shapes=[
                pltpu.VMEM((2 * n_pad, fdim), compute_dtype),  # activations (ping-pong)
                pltpu.VMEM((tile, fdim), jnp.float32),         # aggregation accumulator
            ],
        ),
        compiler_params=pltpu.CompilerParams(
            # Layers carry state through per-core VMEM scratch and k is a
            # reduction => the grid must run sequentially on one TensorCore.
            dimension_semantics=("arbitrary", "arbitrary", "arbitrary"),
            vmem_limit_bytes=vmem_limit,
        ),
    )(x_pad, a_pad, w_stack, scale_stack, shift_stack)

    return out_pad[:n, :out_dim]


# ----------------------------- params & reference ----------------------------

def init_params(key, input_dim, hidden_dim, output_dim):
    dims = [(input_dim, hidden_dim), (hidden_dim, hidden_dim),
            (hidden_dim, hidden_dim), (hidden_dim, output_dim)]
    params = []
    for li, (fi, fo) in enumerate(dims):
        k_w, k_b, k_g, k_be, k_m, k_v, key = jax.random.split(key, 7)
        w = jax.random.normal(k_w, (fi, fo), jnp.float32) * (1.0 / jnp.sqrt(fi))
        b = jax.random.normal(k_b, (1, fo), jnp.float32) * 0.01
        if li < 3:  # layers with BatchNorm1d (eval-mode running stats)
            gamma = 1.0 + 0.1 * jax.random.normal(k_g, (1, fo), jnp.float32)
            beta = 0.1 * jax.random.normal(k_be, (1, fo), jnp.float32)
            rmean = 0.1 * jax.random.normal(k_m, (1, fo), jnp.float32)
            rvar = 1.0 + 0.1 * jax.nn.softplus(jax.random.normal(k_v, (1, fo)))
            eps = 1e-5
            scale = gamma / jnp.sqrt(rvar + eps)
            shift = beta - rmean * scale
        else:
            scale = jnp.ones((1, fo), jnp.float32)
            shift = jnp.zeros((1, fo), jnp.float32)
        params.append((w, b, scale, shift))
    return params


def gnn_forward_ref(x, edge_index, params):
    """Plain-JAX f32 reference with the original module semantics."""
    a_hat = build_normalized_adjacency(edge_index, x.shape[0])
    h = x
    for li, (w, b, scale, shift) in enumerate(params):
        h = a_hat @ (h @ w) + b
        if li < 3:
            h = jnp.maximum(h * scale + shift, 0.0)
    return h


# ----------------------------------- main ------------------------------------

if __name__ == "__main__":
    num_nodes = 64
    num_edges = 128
    input_dim, hidden_dim, output_dim = 16, 32, 8

    key = jax.random.PRNGKey(0)
    k_x, k_src, k_dst, k_p = jax.random.split(key, 4)

    x = jax.random.normal(k_x, (num_nodes, input_dim), jnp.float32)
    edge_index = jnp.stack([
        jax.random.randint(k_src, (num_edges,), 0, num_nodes, jnp.int32),
        jax.random.randint(k_dst, (num_edges,), 0, num_nodes, jnp.int32),
    ], axis=0)

    params = init_params(k_p, input_dim, hidden_dim, output_dim)

    ref = jax.block_until_ready(gnn_forward_ref(x, edge_index, params))

    # Exact-semantics check with a f32 compute path.
    out_f32 = jax.block_until_ready(
        gnn_forward(x, edge_index, params, compute_dtype=jnp.float32))
    assert out_f32.shape == (num_nodes, output_dim), out_f32.shape
    assert jnp.allclose(out_f32, ref, atol=2e-3, rtol=2e-3), \
        "f32 kernel mismatch vs JAX reference"

    # Performance path: bf16 storage for A_hat / activations / W, f32 accumulation.
    out_bf16 = jax.block_until_ready(
        gnn_forward(x, edge_index, params, compute_dtype=jnp.bfloat16))
    assert out_bf16.shape == (num_nodes, output_dim), out_bf16.shape
    assert jnp.allclose(out_bf16, ref, atol=1e-1, rtol=1e-1), \
        "bf16 kernel mismatch vs JAX reference"

    print("KERNEL_OK")
</pallas_src>

<mosaic_0001>
module attributes {stable_mosaic.version = 11 : i64} {
  func.func @fused_gnn_kernel(%arg0: i32, %arg1: i32, %arg2: i32, %arg3: memref<128x128xf32, #tpu.memory_space<vmem>>, %arg4: memref<128x128xf32, #tpu.memory_space<vmem>>, %arg5: memref<1x128x128xf32, #tpu.memory_space<vmem>>, %arg6: memref<1x1x128xf32, #tpu.memory_space<vmem>>, %arg7: memref<1x1x128xf32, #tpu.memory_space<vmem>>, %arg8: memref<128x128xf32, #tpu.memory_space<vmem>>, %arg9: memref<256x128xf32, #tpu.memory_space<vmem>>, %arg10: memref<128x128xf32, #tpu.memory_space<vmem>>) attributes {dimension_semantics = [#tpu.dimension_semantics<arbitrary>, #tpu.dimension_semantics<arbitrary>, #tpu.dimension_semantics<arbitrary>], iteration_bounds = array<i64: 4, 1, 1>, scalar_prefetch = 0 : i64, scratch_operands = 2 : i64, tpu.core_type = #tpu.core_type<tc>, window_params = [{pipeline_mode = #tpu.pipeline_mode<synchronous>, transform_indices = @transform_0, window_bounds = array<i64: 128, 128>}, {transform_indices = @transform_1, window_bounds = array<i64: 128, 128>}, {transform_indices = @transform_2, window_bounds = array<i64: 1, 128, 128>}, {transform_indices = @transform_3, window_bounds = array<i64: 1, 1, 128>}, {transform_indices = @transform_4, window_bounds = array<i64: 1, 1, 128>}, {transform_indices = @transform_5, window_bounds = array<i64: 128, 128>}]} {
    %c0_i32 = arith.constant 0 : i32
    %0 = arith.cmpi eq, %arg0, %c0_i32 : i32
    %c0_i32_0 = arith.constant 0 : i32
    %1 = arith.cmpi eq, %arg1, %c0_i32_0 : i32
    %2 = arith.andi %0, %1 : i1
    %c0_i32_1 = arith.constant 0 : i32
    %3 = arith.cmpi eq, %arg2, %c0_i32_1 : i32
    %4 = arith.andi %2, %3 : i1
    %5 = arith.extui %4 : i1 to i32
    %c0_i32_2 = arith.constant 0 : i32
    %6 = arith.cmpi ne, %5, %c0_i32_2 : i32
    scf.if %6 {
      %c0_18 = arith.constant 0 : index
      %c0_19 = arith.constant 0 : index
      %34 = vector.load %arg3[%c0_18, %c0_19] : memref<128x128xf32, #tpu.memory_space<vmem>>, vector<128x128xf32>
      %c0_20 = arith.constant 0 : index
      %c0_21 = arith.constant 0 : index
      %35 = vector.load %arg9[%c0_20, %c0_21] : memref<256x128xf32, #tpu.memory_space<vmem>>, vector<128x128xf32>
      tpu.vector_store %arg9[%c0_20, %c0_21], %34 {strides = array<i32>} : memref<256x128xf32, #tpu.memory_space<vmem>>, vector<128x128xf32>,
    } else {
    }
    %c0_i32_3 = arith.constant 0 : i32
    %7 = arith.cmpi eq, %arg2, %c0_i32_3 : i32
    %8 = arith.extui %7 : i1 to i32
    %c0_i32_4 = arith.constant 0 : i32
    %9 = arith.cmpi ne, %8, %c0_i32_4 : i32
    scf.if %9 {
      %cst_18 = arith.constant 0.000000e+00 : f32
      %34 = vector.broadcast %cst_18 : f32 to vector<128x128xf32>
      %c0_19 = arith.constant 0 : index
      %c0_20 = arith.constant 0 : index
      %35 = vector.load %arg10[%c0_19, %c0_20] : memref<128x128xf32, #tpu.memory_space<vmem>>, vector<128x128xf32>
      tpu.vector_store %arg10[%c0_19, %c0_20], %34 {strides = array<i32>} : memref<128x128xf32, #tpu.memory_space<vmem>>, vector<128x128xf32>,
    } else {
    }
    %c2_i32 = arith.constant 2 : i32
    %c0_i32_5 = arith.constant 0 : i32
    %10 = arith.cmpi eq, %c2_i32, %c0_i32_5 : i32
    %c1_i32 = arith.constant 1 : i32
    %11 = arith.select %10, %c1_i32, %c2_i32 : i32
    %12 = arith.remsi %arg0, %11 : i32
    %c0_i32_6 = arith.constant 0 : i32
    %13 = arith.cmpi ne, %12, %c0_i32_6 : i32
    %c0_i32_7 = arith.constant 0 : i32
    %14 = arith.cmpi slt, %12, %c0_i32_7 : i32
    %c0_i32_8 = arith.constant 0 : i32
    %15 = arith.cmpi slt, %11, %c0_i32_8 : i32
    %16 = arith.xori %14, %15 : i1
    %17 = arith.andi %16, %13 : i1
    %18 = arith.addi %12, %11 : i32
    %19 = arith.select %17, %18, %12 : i32
    %c128_i32 = arith.constant 128 : i32
    %20 = arith.muli %19, %c128_i32 : i32
    %c128_i32_9 = arith.constant 128 : i32
    %21 = arith.muli %arg2, %c128_i32_9 : i32
    %22 = arith.addi %20, %21 : i32
    %23 = tpu.assume_multiple %22, 128 : i32
    %24 = arith.index_cast %23 : i32 to index
    %c0 = arith.constant 0 : index
    %25 = vector.load %arg9[%24, %c0] : memref<256x128xf32, #tpu.memory_space<vmem>>, vector<128x128xf32>
    %c0_10 = arith.constant 0 : index
    %c0_11 = arith.constant 0 : index
    %26 = vector.load %arg10[%c0_10, %c0_11] : memref<128x128xf32, #tpu.memory_space<vmem>>, vector<128x128xf32>
    %c0_12 = arith.constant 0 : index
    %c0_13 = arith.constant 0 : index
    %27 = vector.load %arg4[%c0_12, %c0_13] : memref<128x128xf32, #tpu.memory_space<vmem>>, vector<128x128xf32>
    %cst = arith.constant dense<0.000000e+00> : vector<128x128xf32>
    %28 = tpu.matmul %27, %25, %cst {dimension_numbers = #tpu.dot_dimension_numbers<[1], [0], [0], [1], [0, 0, 1, 1], [], []>} : vector<128x128xf32>, vector<128x128xf32>, vector<128x128xf32> -> vector<128x128xf32>
    %29 = arith.addf %26, %28 : vector<128x128xf32>
    %c0_14 = arith.constant 0 : index
    %c0_15 = arith.constant 0 : index
    %30 = vector.load %arg10[%c0_14, %c0_15] : memref<128x128xf32, #tpu.memory_space<vmem>>, vector<128x128xf32>
    tpu.vector_store %arg10[%c0_14, %c0_15], %29 {strides = array<i32>} : memref<128x128xf32, #tpu.memory_space<vmem>>, vector<128x128xf32>,
    %c0_i32_16 = arith.constant 0 : i32
    %31 = arith.cmpi eq, %arg2, %c0_i32_16 : i32
    %32 = arith.extui %31 : i1 to i32
    %c0_i32_17 = arith.constant 0 : i32
    %33 = arith.cmpi ne, %32, %c0_i32_17 : i32
    scf.if %33 {
      %c0_18 = arith.constant 0 : index
      %c0_19 = arith.constant 0 : index
      %34 = vector.load %arg10[%c0_18, %c0_19] : memref<128x128xf32, #tpu.memory_space<vmem>>, vector<128x128xf32>
      %c0_20 = arith.constant 0 : index
      %c0_21 = arith.constant 0 : index
      %c0_22 = arith.constant 0 : index
      %35 = vector.load %arg5[%c0_20, %c0_21, %c0_22] : memref<1x128x128xf32, #tpu.memory_space<vmem>>, vector<1x128x128xf32>
      %36 = vector.shape_cast %35 : vector<1x128x128xf32> to vector<128x128xf32>
      %cst_23 = arith.constant dense<0.000000e+00> : vector<128x128xf32>
      %37 = tpu.matmul %34, %36, %cst_23 {dimension_numbers = #tpu.dot_dimension_numbers<[1], [0], [0], [1], [0, 0, 1, 1], [], []>} : vector<128x128xf32>, vector<128x128xf32>, vector<128x128xf32> -> vector<128x128xf32>
      %c0_24 = arith.constant 0 : index
      %c0_25 = arith.constant 0 : index
      %c0_26 = arith.constant 0 : index
      %38 = vector.load %arg6[%c0_24, %c0_25, %c0_26] : memref<1x1x128xf32, #tpu.memory_space<vmem>>, vector<1x1x128xf32>
      %39 = vector.shape_cast %38 : vector<1x1x128xf32> to vector<1x128xf32>
      %40 = vector.broadcast %39 : vector<1x128xf32> to vector<128x128xf32>
      %41 = arith.mulf %37, %40 : vector<128x128xf32>
      %c0_27 = arith.constant 0 : index
      %c0_28 = arith.constant 0 : index
      %c0_29 = arith.constant 0 : index
      %42 = vector.load %arg7[%c0_27, %c0_28, %c0_29] : memref<1x1x128xf32, #tpu.memory_space<vmem>>, vector<1x1x128xf32>
      %43 = vector.shape_cast %42 : vector<1x1x128xf32> to vector<1x128xf32>
      %44 = vector.broadcast %43 : vector<1x128xf32> to vector<128x128xf32>
      %45 = arith.addf %41, %44 : vector<128x128xf32>
      %c3_i32 = arith.constant 3 : i32
      %46 = arith.cmpi slt, %arg0, %c3_i32 : i32
      %cst_30 = arith.constant 0.000000e+00 : f32
      %cst_31 = arith.constant 0xFF800000 : f32
      %47 = arith.select %46, %cst_30, %cst_31 : f32
      %48 = vector.broadcast %47 : f32 to vector<128x128xf32>
      %49 = arith.maximumf %45, %48 : vector<128x128xf32>
      %c1_i32_32 = arith.constant 1 : i32
      %50 = arith.addi %arg0, %c1_i32_32 : i32
      %c2_i32_33 = arith.constant 2 : i32
      %c0_i32_34 = arith.constant 0 : i32
      %51 = arith.cmpi eq, %c2_i32_33, %c0_i32_34 : i32
      %c1_i32_35 = arith.constant 1 : i32
      %52 = arith.select %51, %c1_i32_35, %c2_i32_33 : i32
      %53 = arith.remsi %50, %52 : i32
      %c0_i32_36 = arith.constant 0 : i32
      %54 = arith.cmpi ne, %53, %c0_i32_36 : i32
      %c0_i32_37 = arith.constant 0 : i32
      %55 = arith.cmpi slt, %53, %c0_i32_37 : i32
      %c0_i32_38 = arith.constant 0 : i32
      %56 = arith.cmpi slt, %52, %c0_i32_38 : i32
      %57 = arith.xori %55, %56 : i1
      %58 = arith.andi %57, %54 : i1
      %59 = arith.addi %53, %52 : i32
      %60 = arith.select %58, %59, %53 : i32
      %c128_i32_39 = arith.constant 128 : i32
      %61 = arith.muli %60, %c128_i32_39 : i32
      %c128_i32_40 = arith.constant 128 : i32
      %62 = arith.muli %arg1, %c128_i32_40 : i32
      %63 = arith.addi %61, %62 : i32
      %64 = tpu.assume_multiple %63, 128 : i32
      %65 = arith.index_cast %64 : i32 to index
      %c0_41 = arith.constant 0 : index
      %66 = vector.load %arg9[%65, %c0_41] : memref<256x128xf32, #tpu.memory_space<vmem>>, vector<128x128xf32>
      tpu.vector_store %arg9[%65, %c0_41], %49 {strides = array<i32>} : memref<256x128xf32, #tpu.memory_space<vmem>>, vector<128x128xf32>,
      %c0_42 = arith.constant 0 : index
      %c0_43 = arith.constant 0 : index
      %67 = vector.load %arg8[%c0_42, %c0_43] : memref<128x128xf32, #tpu.memory_space<vmem>>, vector<128x128xf32>
      tpu.vector_store %arg8[%c0_42, %c0_43], %49 {strides = array<i32>} : memref<128x128xf32, #tpu.memory_space<vmem>>, vector<128x128xf32>,
    } else {
    }
    return
  }
  func.func @transform_0(%arg0: i32, %arg1: i32, %arg2: i32) -> (i32, i32) {
    %c0_i32 = arith.constant 0 : i32
    %c0_i32_0 = arith.constant 0 : i32
    %c0_i32_1 = arith.constant 0 : i32
    return %c0_i32, %c0_i32_0 : i32, i32
  }
  func.func @transform_1(%arg0: i32, %arg1: i32, %arg2: i32) -> (i32, i32) {
    %c0_i32 = arith.constant 0 : i32
    return %arg1, %arg2 : i32, i32
  }
  func.func @transform_2(%arg0: i32, %arg1: i32, %arg2: i32) -> (i32, i32, i32) {
    %c0_i32 = arith.constant 0 : i32
    %c0_i32_0 = arith.constant 0 : i32
    %c0_i32_1 = arith.constant 0 : i32
    return %arg0, %c0_i32, %c0_i32_0 : i32, i32, i32
  }
  func.func @transform_3(%arg0: i32, %arg1: i32, %arg2: i32) -> (i32, i32, i32) {
    %c0_i32 = arith.constant 0 : i32
    %c0_i32_0 = arith.constant 0 : i32
    %c0_i32_1 = arith.constant 0 : i32
    return %arg0, %c0_i32, %c0_i32_0 : i32, i32, i32
  }
  func.func @transform_4(%arg0: i32, %arg1: i32, %arg2: i32) -> (i32, i32, i32) {
    %c0_i32 = arith.constant 0 : i32
    %c0_i32_0 = arith.constant 0 : i32
    %c0_i32_1 = arith.constant 0 : i32
    return %arg0, %c0_i32, %c0_i32_0 : i32, i32, i32
  }
  func.func @transform_5(%arg0: i32, %arg1: i32, %arg2: i32) -> (i32, i32) {
    %c0_i32 = arith.constant 0 : i32
    %c0_i32_0 = arith.constant 0 : i32
    return %arg1, %c0_i32 : i32, i32
  }
}

</mosaic_0001>

<llo_original>
// kernel: tpu_custom_call.1
$region0: #{tpu_custom_call.1}
  #allocation0 [shape = 'u32[]', space=smem, size = 0x4, offset = 0x4, fixed_abs, tag = 'smem constant byte address 0x4 - core index']
  #allocation1 [shape = 'u32[72,128]{1,0:T(1,128)}', space=vmem, size = 0x9000, scoped, tag = 'internal scratch']
  #allocation2 [shape = 'f32[256,128]{1,0:T(8,128)}', space=vmem, size = 0x20000, scoped, tag = 'scratch operand']
  #allocation3 [shape = 'f32[128,128]{1,0:T(8,128)}', space=vmem, size = 0x10000, scoped, tag = 'scratch operand']
  %s0 = inlined_call_operand.hbm [shape: f32[128,128], index: 0, kind: input, shape index: {}]
  %s1 = inlined_call_operand.hbm [shape: f32[128,128], index: 1, kind: input, shape index: {}]
  %s2 = inlined_call_operand.hbm [shape: f32[4,128,128], index: 2, kind: input, shape index: {}]
  %s3 = inlined_call_operand.hbm [shape: f32[4,1,128], index: 3, kind: input, shape index: {}]
  %s4 = inlined_call_operand.hbm [shape: f32[4,1,128], index: 4, kind: input, shape index: {}]
  %s5 = inlined_call_operand.hbm [shape: f32[128,128], index: 5, kind: output, shape index: {}]
  %s6 = sld [smem:[#allocation0]]
  $region85: #{tpu_custom_call.1} parent=0
    _
  %s8 = ssub.s32 1, %s6
  %s9 = scalar_select 0, %s8, %s6
  $region1: #{tpu_custom_call.1} parent=0
    #allocation4 [shape = 'u8[65536]{0}', space=vmem, size = 0x10000, scoped, tag = 'input window, operand 0, single buffered']
    #allocation5 [shape = 's32[2]{0}', space=sflag, size = 0x8, scoped, tag = 'scoped memory for tpu_custom_call.1']
    #allocation6 [shape = 's32[2]{0}', space=sflag, size = 0x8, scoped, tag = 'scoped memory for tpu_custom_call.1']
    #allocation7 [shape = 'u8[65536]{0}', space=vmem, size = 0x10000, scoped, tag = 'input window, operand 1, single buffered']
    #allocation8 [shape = 's32[1]{0}', space=sflag, size = 0x4, scoped, tag = 'scoped memory for tpu_custom_call.1']
    #allocation9 [shape = 'u8[131072]{0}', space=vmem, size = 0x20000, scoped, tag = 'input window, operand 2']
    #allocation10 [shape = 'u8[1024]{0}', space=vmem, size = 0x400, scoped, tag = 'input window, operand 3']
    #allocation11 [shape = 'u8[1024]{0}', space=vmem, size = 0x400, scoped, tag = 'input window, operand 4']
    #allocation12 [shape = 'u8[65536]{0}', space=vmem, size = 0x10000, scoped, tag = 'output window, operand 0, single buffered']
    %10 = vsyncpa [#allocation5], 0
    %11 = vsyncpa [#allocation8], 0
    %12 = vsyncpa [#allocation6], 0
    loop: start=0, step=1, limit=6
    $region2: #{tpu_custom_call.1} parent=1 // loop_pre_header
      _
    $region3: #{tpu_custom_call.1} parent=1 // loop_header
      %s14 = sphi 0, %s18
      %p15 = scmp.ge.s32.totalorder %s14, 6
      %s21 = sphi 0, %s40
      %s22 = sphi 0, %s36
      %s23 = sphi 0, %s32
      %s24 = sphi 0, %s21
      %s25 = sphi 0, %s22
      %s26 = sphi 0, %s23
      %s27 = sphi 0, %s24
      %s28 = sphi 0, %s25
      %s29 = sphi 0, %s26
      %s41 = sphi 0, %s41
      %s43 = sphi 0, %s41
      %s44 = sphi 0, %s43
      %s58 = sphi 0, %s44
      %s66 = sphi 0, %s68
      %s69 = sphi 0, %s66
      %s70 = sphi 0, %s69
      %s86 = sphi 0, %s70
      %s92 = sphi 0, %s94
      %s95 = sphi 0, %s92
      %s96 = sphi 0, %s95
      %s112 = sphi 0, %s96
      %s118 = sphi 0, %s120
      %s121 = sphi 0, %s118
      %s122 = sphi 0, %s121
      %s138 = sphi 0, %s122
      %s144 = sphi 0, %s146
      %s147 = sphi 0, %s144
      %s148 = sphi 0, %s147
      %s164 = sphi 0, %s148
      %s170 = sphi 0, %s172
      %s173 = sphi 0, %s170
      %s174 = sphi 0, %s173
      %s190 = sphi 0, %s174
    $region4: #{tpu_custom_call.1} parent=1 // loop_header_branch
      %17 = sbr.rel (%p15) target = $region8
    $region5: #{tpu_custom_call.1} parent=1 // loop_body
      %s19 = ssub.s32 %s14, 1
      %s20 = ssub.s32 %s14, 2
      %s30 = sadd.s32 1, %s23
      %p31 = scmp.ge.s32.totalorder %s30, 1
      %s32 = scalar_select %p31, 0, %s30
      %s33 = sadd.s32 1, %s22
      %s34 = scalar_select %p31, %s33, %s22
      %p35 = scmp.ge.s32.totalorder %s34, 1
      %s36 = scalar_select %p35, 0, %s34
      %s37 = sadd.s32 1, %s21
      %s38 = scalar_select %p35, %s37, %s21
      %p39 = scmp.ge.s32.totalorder %s38, 4
      %s40 = scalar_select %p39, 0, %s38
      %s42 = sadd.s32 %s41, 1
      %p45 = scmp.eq.s32.totalorder %s14, 3
      %p46 = scmp.ne.s32.totalorder %s41, %s43
      %p47 = scmp.eq.s32.totalorder %s14, 0
      %p48 = por %p46, %p47
      %p49 = scmp.ne.s32.totalorder %s41, %s43
      %p50 = scmp.eq.s32.totalorder %s19, 3
      %p51 = por %p49, %p50
      %p52 = scmp.ne.s32.totalorder %s43, %s44
      %p53 = scmp.eq.s32.totalorder %s19, 0
      %p54 = por %p52, %p53
      %p55 = scmp.ne.s32.totalorder %s43, %s44
      %p56 = scmp.eq.s32.totalorder %s20, 3
      %p57 = por %p55, %p56
      %p59 = scmp.ne.s32.totalorder %s44, %s58
      %p60 = scmp.eq.s32.totalorder %s20, 0
      %p61 = por %p59, %p60
      %s62 = ssub.s32 %s22, %s36
      %s63 = ssub.s32 %s23, %s32
      %s64 = sor.u32 %s62, %s63
      %p65 = scmp.eq.s32.totalorder %s64, 0
      %s67 = sadd.s32 %s66, 1
      %s68 = scalar_select %p65, %s66, %s67
      %p71 = pneg %p65
      %p72 = scmp.eq.s32.totalorder %s14, 3
      %p73 = por %p71, %p72
      %p74 = scmp.ne.s32.totalorder %s66, %s69
      %p75 = scmp.eq.s32.totalorder %s14, 0
      %p76 = por %p74, %p75
      %p77 = scmp.ne.s32.totalorder %s66, %s69
      %p78 = scmp.eq.s32.totalorder %s19, 3
      %p79 = por %p77, %p78
      %p80 = scmp.ne.s32.totalorder %s69, %s70
      %p81 = scmp.eq.s32.totalorder %s19, 0
      %p82 = por %p80, %p81
      %p83 = scmp.ne.s32.totalorder %s69, %s70
      %p84 = scmp.eq.s32.totalorder %s20, 3
      %p85 = por %p83, %p84
      %p87 = scmp.ne.s32.totalorder %s70, %s86
      %p88 = scmp.eq.s32.totalorder %s20, 0
      %p89 = por %p87, %p88
      %s90 = ssub.s32 %s21, %s40
      %p91 = scmp.eq.s32.totalorder %s90, 0
      %s93 = sadd.s32 %s92, 1
      %s94 = scalar_select %p91, %s92, %s93
      %p97 = pneg %p91
      %p98 = scmp.eq.s32.totalorder %s14, 3
      %p99 = por %p97, %p98
      %p100 = scmp.ne.s32.totalorder %s92, %s95
      %p101 = scmp.eq.s32.totalorder %s14, 0
      %p102 = por %p100, %p101
      %p103 = scmp.ne.s32.totalorder %s92, %s95
      %p104 = scmp.eq.s32.totalorder %s19, 3
      %p105 = por %p103, %p104
      %p106 = scmp.ne.s32.totalorder %s95, %s96
      %p107 = scmp.eq.s32.totalorder %s19, 0
      %p108 = por %p106, %p107
      %p109 = scmp.ne.s32.totalorder %s95, %s96
      %p110 = scmp.eq.s32.totalorder %s20, 3
      %p111 = por %p109, %p110
      %p113 = scmp.ne.s32.totalorder %s96, %s112
      %p114 = scmp.eq.s32.totalorder %s20, 0
      %p115 = por %p113, %p114
      %s116 = ssub.s32 %s21, %s40
      %p117 = scmp.eq.s32.totalorder %s116, 0
      %s119 = sadd.s32 %s118, 1
      %s120 = scalar_select %p117, %s118, %s119
      %p123 = pneg %p117
      %p124 = scmp.eq.s32.totalorder %s14, 3
      %p125 = por %p123, %p124
      %p126 = scmp.ne.s32.totalorder %s118, %s121
      %p127 = scmp.eq.s32.totalorder %s14, 0
      %p128 = por %p126, %p127
      %p129 = scmp.ne.s32.totalorder %s118, %s121
      %p130 = scmp.eq.s32.totalorder %s19, 3
      %p131 = por %p129, %p130
      %p132 = scmp.ne.s32.totalorder %s121, %s122
      %p133 = scmp.eq.s32.totalorder %s19, 0
      %p134 = por %p132, %p133
      %p135 = scmp.ne.s32.totalorder %s121, %s122
      %p136 = scmp.eq.s32.totalorder %s20, 3
      %p137 = por %p135, %p136
      %p139 = scmp.ne.s32.totalorder %s122, %s138
      %p140 = scmp.eq.s32.totalorder %s20, 0
      %p141 = por %p139, %p140
      %s142 = ssub.s32 %s21, %s40
      %p143 = scmp.eq.s32.totalorder %s142, 0
      %s145 = sadd.s32 %s144, 1
      %s146 = scalar_select %p143, %s144, %s145
      %p149 = pneg %p143
      %p150 = scmp.eq.s32.totalorder %s14, 3
      %p151 = por %p149, %p150
      %p152 = scmp.ne.s32.totalorder %s144, %s147
      %p153 = scmp.eq.s32.totalorder %s14, 0
      %p154 = por %p152, %p153
      %p155 = scmp.ne.s32.totalorder %s144, %s147
      %p156 = scmp.eq.s32.totalorder %s19, 3
      %p157 = por %p155, %p156
      %p158 = scmp.ne.s32.totalorder %s147, %s148
      %p159 = scmp.eq.s32.totalorder %s19, 0
      %p160 = por %p158, %p159
      %p161 = scmp.ne.s32.totalorder %s147, %s148
      %p162 = scmp.eq.s32.totalorder %s20, 3
      %p163 = por %p161, %p162
      %p165 = scmp.ne.s32.totalorder %s148, %s164
      %p166 = scmp.eq.s32.totalorder %s20, 0
      %p167 = por %p165, %p166
      %s168 = ssub.s32 %s22, %s36
      %p169 = scmp.eq.s32.totalorder %s168, 0
      %s171 = sadd.s32 %s170, 1
      %s172 = scalar_select %p169, %s170, %s171
      %p175 = pneg %p169
      %p176 = scmp.eq.s32.totalorder %s14, 3
      %p177 = por %p175, %p176
      %p178 = scmp.ne.s32.totalorder %s170, %s173
      %p179 = scmp.eq.s32.totalorder %s14, 0
      %p180 = por %p178, %p179
      %p181 = scmp.ne.s32.totalorder %s170, %s173
      %p182 = scmp.eq.s32.totalorder %s19, 3
      %p183 = por %p181, %p182
      %p184 = scmp.ne.s32.totalorder %s173, %s174
      %p185 = scmp.eq.s32.totalorder %s19, 0
      %p186 = por %p184, %p185
      %p187 = scmp.ne.s32.totalorder %s173, %s174
      %p188 = scmp.eq.s32.totalorder %s20, 3
      %p189 = por %p187, %p188
      %p191 = scmp.ne.s32.totalorder %s174, %s190
      %p192 = scmp.eq.s32.totalorder %s20, 0
      %p193 = por %p191, %p192
      %p194 = scmp.le.s32.totalorder 1, %s14
      %p195 = scmp.lt.s32.totalorder %s14, 5
      %p196 = pnand %p194, %p195
      %p197 = pneg %p196
      // Predicated region
      $region9: #{tpu_custom_call.1} parent=5 // pred_check
        _
      $region10: #{tpu_custom_call.1} parent=5 // pred_check_branch
        %199 = sbr.rel (%p196) target = $region12
      $region11: #{tpu_custom_call.1} parent=5 // pred_region
        %s200 = ssub.s32 %s14, 1
        // Predicated region
        $region13: #{tpu_custom_call.1} parent=11 // pred_check
          %p201 = pneg %p54
        $region14: #{tpu_custom_call.1} parent=11 // pred_check_branch
          %203 = sbr.rel (%p201) target = $region16
        $region15: #{tpu_custom_call.1} parent=11 // pred_region
          %205 = vsyncadd [#allocation5], 0
          %s206 = sshll.u32 %s0, 4
          %s207 = int_to_ptr.hbm [resolvable:$true] %s206
          %s208 = sshll.u32 [#allocation4], 4
          %s209 = int_to_ptr.vmem [resolvable:$true] %s208
          %214 = dma.hbm_to_vmem [thread:$0]  %s207, 2048, %s209, [#allocation5], 128, 128, 8
        $region16: #{tpu_custom_call.1} parent=11 // pred_fallthru
          _
        // Predicated region
        $region17: #{tpu_custom_call.1} parent=11 // pred_check
          %p215 = pneg %p82
        $region18: #{tpu_custom_call.1} parent=11 // pred_check_branch
          %217 = sbr.rel (%p215) target = $region20
        $region19: #{tpu_custom_call.1} parent=11 // pred_region
          %s218 = smul.u32 16, %s25
          %220 = vsyncadd [#allocation8], 0
          %s221 = sadd.s32 %s26, %s218
          %s222 = smul.addr %s221, 8
          %s223 = scalar_lea.hbm %s1, %s222
          %s224 = sshll.u32 %s223, 4
          %s225 = int_to_ptr.hbm [resolvable:$true] %s224
          %s226 = sshll.u32 [#allocation7], 4
          %s227 = int_to_ptr.vmem [resolvable:$true] %s226
          %232 = dma.hbm_to_vmem [thread:$0]  %s225, 2048, %s227, [#allocation8], 128, 128, 8
        $region20: #{tpu_custom_call.1} parent=11 // pred_fallthru
          _
      $region12: #{tpu_custom_call.1} parent=5 // pred_fallthru
        _
      %p233 = scmp.lt.s32.totalorder %s14, 4
      // Predicated region
      $region21: #{tpu_custom_call.1} parent=5 // pred_check
        %p234 = pneg %p233
      $region22: #{tpu_custom_call.1} parent=5 // pred_check_branch
        %236 = sbr.rel (%p234) target = $region24
      $region23: #{tpu_custom_call.1} parent=5 // pred_region
        // Predicated region
        $region25: #{tpu_custom_call.1} parent=23 // pred_check
          %p237 = pneg %p102
        $region26: #{tpu_custom_call.1} parent=23 // pred_check_branch
          %239 = sbr.rel (%p237) target = $region28
        $region27: #{tpu_custom_call.1} parent=23 // pred_region
          %s240 = sand.u32 %s14, 1
          %s241 = scalar_lea.sflag [#allocation5], %s240
          %s242 = sand.u32 %s92, 1
          %s243 = smul.addr %s242, 128
          %s244 = scalar_lea.vmem [#allocation9], %s243
          %246 = vsyncadd %s241, 0
          %s247 = smul.addr %s21, 16
          %s248 = smul.addr %s247, 8
          %s249 = scalar_lea.hbm %s2, %s248
          %s250 = sshll.u32 %s249, 4
          %s251 = int_to_ptr.hbm [resolvable:$true] %s250
          %s252 = sshll.u32 %s244, 4
          %s253 = int_to_ptr.vmem [resolvable:$true] %s252
          %258 = dma.hbm_to_vmem [thread:$0]  %s251, 2048, %s253, %s241, 128, 128, 8
        $region28: #{tpu_custom_call.1} parent=23 // pred_fallthru
          _
        // Predicated region
        $region29: #{tpu_custom_call.1} parent=23 // pred_check
          %p259 = pneg %p128
        $region30: #{tpu_custom_call.1} parent=23 // pred_check_branch
          %261 = sbr.rel (%p259) target = $region32
        $region31: #{tpu_custom_call.1} parent=23 // pred_region
          %s262 = sand.u32 %s14, 1
          %s263 = scalar_lea.sflag [#allocation5], %s262
          %s264 = sand.u32 %s118, 1
          %s265 = scalar_lea.vmem [#allocation10], %s264
          %267 = vsyncadd %s263, 0
          %s268 = scalar_lea.hbm %s3, %s21
          %s270 = sshll.u32 %s268, 4
          %s271 = int_to_ptr.hbm [resolvable:$true] %s270
          %s272 = sshll.u32 %s265, 4
          %s273 = int_to_ptr.vmem [resolvable:$true] %s272
          %275 = dma.hbm_to_vmem [thread:$0]  %s271, 16, %s273, %s263
        $region32: #{tpu_custom_call.1} parent=23 // pred_fallthru
          _
        // Predicated region
        $region33: #{tpu_custom_call.1} parent=23 // pred_check
          %p276 = pneg %p154
        $region34: #{tpu_custom_call.1} parent=23 // pred_check_branch
          %278 = sbr.rel (%p276) target = $region36
        $region35: #{tpu_custom_call.1} parent=23 // pred_region
          %s279 = sand.u32 %s14, 1
          %s280 = scalar_lea.sflag [#allocation5], %s279
          %s281 = sand.u32 %s144, 1
          %s282 = scalar_lea.vmem [#allocation11], %s281
          %284 = vsyncadd %s280, 0
          %s285 = scalar_lea.hbm %s4, %s21
          %s287 = sshll.u32 %s285, 4
          %s288 = int_to_ptr.hbm [resolvable:$true] %s287
          %s289 = sshll.u32 %s282, 4
          %s290 = int_to_ptr.vmem [resolvable:$true] %s289
          %292 = dma.hbm_to_vmem [thread:$0]  %s288, 16, %s290, %s280
        $region36: #{tpu_custom_call.1} parent=23 // pred_fallthru
          _
      $region24: #{tpu_custom_call.1} parent=5 // pred_fallthru
        _
      %p293 = scmp.le.s32.totalorder 1, %s14
      %p294 = scmp.lt.s32.totalorder %s14, 5
      %p295 = pnand %p293, %p294
      %p296 = pneg %p295
      // Predicated region
      $region37: #{tpu_custom_call.1} parent=5 // pred_check
        _
      $region38: #{tpu_custom_call.1} parent=5 // pred_check_branch
        %298 = sbr.rel (%p295) target = $region40
      $region39: #{tpu_custom_call.1} parent=5 // pred_region
        %s299 = ssub.s32 %s14, 1
        // Predicated region
        $region41: #{tpu_custom_call.1} parent=39 // pred_check
          %p300 = pneg %p54
        $region42: #{tpu_custom_call.1} parent=39 // pred_check_branch
          %302 = sbr.rel (%p300) target = $region44
        $region43: #{tpu_custom_call.1} parent=39 // pred_region
          %304 = dma.done [#allocation5], 2048
        $region44: #{tpu_custom_call.1} parent=39 // pred_fallthru
          _
        // Predicated region
        $region45: #{tpu_custom_call.1} parent=39 // pred_check
          %p305 = pneg %p82
        $region46: #{tpu_custom_call.1} parent=39 // pred_check_branch
          %307 = sbr.rel (%p305) target = $region48
        $region47: #{tpu_custom_call.1} parent=39 // pred_region
          %309 = dma.done [#allocation8], 2048
        $region48: #{tpu_custom_call.1} parent=39 // pred_fallthru
          _
        %s310 = sand.u32 %s19, 1
        %s311 = scalar_lea.sflag [#allocation5], %s310
        %s312 = sand.u32 %s95, 1
        %s313 = smul.addr %s312, 128
        %s314 = scalar_lea.vmem [#allocation9], %s313
        // Predicated region
        $region49: #{tpu_custom_call.1} parent=39 // pred_check
          %p315 = pneg %p108
        $region50: #{tpu_custom_call.1} parent=39 // pred_check_branch
          %317 = sbr.rel (%p315) target = $region52
        $region51: #{tpu_custom_call.1} parent=39 // pred_region
          %319 = dma.done %s311, 2048
        $region52: #{tpu_custom_call.1} parent=39 // pred_fallthru
          _
        %s320 = sand.u32 %s19, 1
        %s321 = scalar_lea.sflag [#allocation5], %s320
        %s322 = sand.u32 %s121, 1
        %s323 = scalar_lea.vmem [#allocation10], %s322
        // Predicated region
        $region53: #{tpu_custom_call.1} parent=39 // pred_check
          %p324 = pneg %p134
        $region54: #{tpu_custom_call.1} parent=39 // pred_check_branch
          %326 = sbr.rel (%p324) target = $region56
        $region55: #{tpu_custom_call.1} parent=39 // pred_region
          %328 = dma.done %s321, 16
        $region56: #{tpu_custom_call.1} parent=39 // pred_fallthru
          _
        %s329 = sand.u32 %s19, 1
        %s330 = scalar_lea.sflag [#allocation5], %s329
        %s331 = sand.u32 %s147, 1
        %s332 = scalar_lea.vmem [#allocation11], %s331
        // Predicated region
        $region57: #{tpu_custom_call.1} parent=39 // pred_check
          %p333 = pneg %p160
        $region58: #{tpu_custom_call.1} parent=39 // pred_check_branch
          %335 = sbr.rel (%p333) target = $region60
        $region59: #{tpu_custom_call.1} parent=39 // pred_region
          %337 = dma.done %s330, 16
        $region60: #{tpu_custom_call.1} parent=39 // pred_fallthru
          _
        %p338 = pneg %p54
        %p339 = pneg %p51
        %p340 = pneg %p82
        %p341 = pneg %p79
        %s342 = sand.u32 %s19, 1
        %s343 = scalar_lea.sflag [#allocation5], %s342
        %s344 = sand.u32 %s95, 1
        %s345 = smul.addr %s344, 128
        %s346 = scalar_lea.vmem [#allocation9], %s345
        %p347 = pneg %p108
        %p348 = pneg %p105
        %s349 = sand.u32 %s19, 1
        %s350 = scalar_lea.sflag [#allocation5], %s349
        %s351 = sand.u32 %s121, 1
        %s352 = scalar_lea.vmem [#allocation10], %s351
        %p353 = pneg %p134
        %p354 = pneg %p131
        %s355 = sand.u32 %s19, 1
        %s356 = scalar_lea.sflag [#allocation5], %s355
        %s357 = sand.u32 %s147, 1
        %s358 = scalar_lea.vmem [#allocation11], %s357
        %p359 = pneg %p160
        %p360 = pneg %p157
        %p361 = pneg %p186
        %p362 = pneg %p183
        %s363 = smul.u32 16, %s25
        %s364 = smul.u32 16, %s25
        %p365 = scmp.eq.s32.totalorder %s24, 0
        %p366 = scmp.eq.s32.totalorder %s25, 0
        %p367 = pnand %p365, %p366
        %p368 = pneg %p367
        %p369 = scmp.eq.s32.totalorder %s26, 0
        %p370 = pnand %p368, %p369
        %p371 = pneg %p370
        // Predicated region
        $region61: #{tpu_custom_call.1} parent=39 // pred_check
          _
        $region62: #{tpu_custom_call.1} parent=39 // pred_check_branch
          %373 = sbr.rel (%p370) target = $region64
        $region63: #{tpu_custom_call.1} parent=39 // pred_region
          %v374 = vld [vmem:[#allocation4] sm:$0xff]
          %v375 = vld [vmem:[#allocation4 + $0x8] sm:$0xff]
          %v376 = vld [vmem:[#allocation4 + $0x10] sm:$0xff]
          %v377 = vld [vmem:[#allocation4 + $0x18] sm:$0xff]
          %v378 = vld [vmem:[#allocation4 + $0x20] sm:$0xff]
          %v379 = vld [vmem:[#allocation4 + $0x28] sm:$0xff]
          %v380 = vld [vmem:[#allocation4 + $0x30] sm:$0xff]
          %v381 = vld [vmem:[#allocation4 + $0x38] sm:$0xff]
          %v382 = vld [vmem:[#allocation4 + $0x40] sm:$0xff]
          %v383 = vld [vmem:[#allocation4 + $0x48] sm:$0xff]
          %v384 = vld [vmem:[#allocation4 + $0x50] sm:$0xff]
          %v385 = vld [vmem:[#allocation4 + $0x58] sm:$0xff]
          %v386 = vld [vmem:[#allocation4 + $0x60] sm:$0xff]
          %v387 = vld [vmem:[#allocation4 + $0x68] sm:$0xff]
          %v388 = vld [vmem:[#allocation4 + $0x70] sm:$0xff]
          %v389 = vld [vmem:[#allocation4 + $0x78] sm:$0xff]
          %390 = vst [vmem:[#allocation2] sm:$0xff] %v374
          %391 = vst [vmem:[#allocation2 + $0x8] sm:$0xff] %v375
          %392 = vst [vmem:[#allocation2 + $0x10] sm:$0xff] %v376
          %393 = vst [vmem:[#allocation2 + $0x18] sm:$0xff] %v377
          %394 = vst [vmem:[#allocation2 + $0x20] sm:$0xff] %v378
          %395 = vst [vmem:[#allocation2 + $0x28] sm:$0xff] %v379
          %396 = vst [vmem:[#allocation2 + $0x30] sm:$0xff] %v380
          %397 = vst [vmem:[#allocation2 + $0x38] sm:$0xff] %v381
          %398 = vst [vmem:[#allocation2 + $0x40] sm:$0xff] %v382
          %399 = vst [vmem:[#allocation2 + $0x48] sm:$0xff] %v383
          %400 = vst [vmem:[#allocation2 + $0x50] sm:$0xff] %v384
          %401 = vst [vmem:[#allocation2 + $0x58] sm:$0xff] %v385
          %402 = vst [vmem:[#allocation2 + $0x60] sm:$0xff] %v386
          %403 = vst [vmem:[#allocation2 + $0x68] sm:$0xff] %v387
          %404 = vst [vmem:[#allocation2 + $0x70] sm:$0xff] %v388
          %405 = vst [vmem:[#allocation2 + $0x78] sm:$0xff] %v389
        $region64: #{tpu_custom_call.1} parent=39 // pred_fallthru
          _
        // Predicated region
        $region65: #{tpu_custom_call.1} parent=39 // pred_check
          %p406 = pneg %p369
        $region66: #{tpu_custom_call.1} parent=39 // pred_check_branch
          %408 = sbr.rel (%p406) target = $region68
        $region67: #{tpu_custom_call.1} parent=39 // pred_region
          %409 = vst [vmem:[#allocation3] sm:$0xff] 0.0
          %410 = vst [vmem:[#allocation3 + $0x8] sm:$0xff] 0.0
          %411 = vst [vmem:[#allocation3 + $0x10] sm:$0xff] 0.0
          %412 = vst [vmem:[#allocation3 + $0x18] sm:$0xff] 0.0
          %413 = vst [vmem:[#allocation3 + $0x20] sm:$0xff] 0.0
          %414 = vst [vmem:[#allocation3 + $0x28] sm:$0xff] 0.0
          %415 = vst [vmem:[#allocation3 + $0x30] sm:$0xff] 0.0
          %416 = vst [vmem:[#allocation3 + $0x38] sm:$0xff] 0.0
          %417 = vst [vmem:[#allocation3 + $0x40] sm:$0xff] 0.0
          %418 = vst [vmem:[#allocation3 + $0x48] sm:$0xff] 0.0
          %419 = vst [vmem:[#allocation3 + $0x50] sm:$0xff] 0.0
          %420 = vst [vmem:[#allocation3 + $0x58] sm:$0xff] 0.0
          %421 = vst [vmem:[#allocation3 + $0x60] sm:$0xff] 0.0
          %422 = vst [vmem:[#allocation3 + $0x68] sm:$0xff] 0.0
          %423 = vst [vmem:[#allocation3 + $0x70] sm:$0xff] 0.0
          %424 = vst [vmem:[#allocation3 + $0x78] sm:$0xff] 0.0
        $region68: #{tpu_custom_call.1} parent=39 // pred_fallthru
          _
        %p425 = scmp.lt.s32.totalorder %s24, 0
        %s426 = ssub.s32 0, %s24
        %s427 = scalar_select %p425, %s426, %s24
        %s428 = sand.u32 %s427, 1
        %s429 = ssub.s32 0, %s428
        %s430 = scalar_select %p425, %s429, %s428
        %p431 = scmp.ne.s32.totalorder %s430, 0
        %p432 = scmp.lt.s32.totalorder %s430, 0
        %p433 = pnand %p432, %p431
        %p434 = pneg %p433
        %s435 = sadd.s32 %s430, 2
        %s436 = scalar_select %p434, %s435, %s430
        %s437 = smul.u32 %s436, 128
        %s438 = smul.u32 %s26, 128
        %s439 = sadd.s32 %s437, %s438
        %s440 = scalar_lea.vmem [#allocation2], %s439
        %v441 = vld [vmem:[%s440] sm:$0xff]
        %v442 = vld [vmem:[%s440 + $0x8] sm:$0xff]
        %v443 = vld [vmem:[%s440 + $0x10] sm:$0xff]
        %v444 = vld [vmem:[%s440 + $0x18] sm:$0xff]
        %v445 = vld [vmem:[%s440 + $0x20] sm:$0xff]
        %v446 = vld [vmem:[%s440 + $0x28] sm:$0xff]
        %v447 = vld [vmem:[%s440 + $0x30] sm:$0xff]
        %v448 = vld [vmem:[%s440 + $0x38] sm:$0xff]
        %v449 = vld [vmem:[%s440 + $0x40] sm:$0xff]
        %v450 = vld [vmem:[%s440 + $0x48] sm:$0xff]
        %v451 = vld [vmem:[%s440 + $0x50] sm:$0xff]
        %v452 = vld [vmem:[%s440 + $0x58] sm:$0xff]
        %v453 = vld [vmem:[%s440 + $0x60] sm:$0xff]
        %v454 = vld [vmem:[%s440 + $0x68] sm:$0xff]
        %v455 = vld [vmem:[%s440 + $0x70] sm:$0xff]
        %v456 = vld [vmem:[%s440 + $0x78] sm:$0xff]
        %v457 = vld [vmem:[#allocation3] sm:$0xff]
        %v458 = vld [vmem:[#allocation3 + $0x8] sm:$0xff]
        %v459 = vld [vmem:[#allocation3 + $0x10] sm:$0xff]
        %v460 = vld [vmem:[#allocation3 + $0x18] sm:$0xff]
        %v461 = vld [vmem:[#allocation3 + $0x20] sm:$0xff]
        %v462 = vld [vmem:[#allocation3 + $0x28] sm:$0xff]
        %v463 = vld [vmem:[#allocation3 + $0x30] sm:$0xff]
        %v464 = vld [vmem:[#allocation3 + $0x38] sm:$0xff]
        %v465 = vld [vmem:[#allocation3 + $0x40] sm:$0xff]
        %v466 = vld [vmem:[#allocation3 + $0x48] sm:$0xff]
        %v467 = vld [vmem:[#allocation3 + $0x50] sm:$0xff]
        %v468 = vld [vmem:[#allocation3 + $0x58] sm:$0xff]
        %v469 = vld [vmem:[#allocation3 + $0x60] sm:$0xff]
        %v470 = vld [vmem:[#allocation3 + $0x68] sm:$0xff]
        %v471 = vld [vmem:[#allocation3 + $0x70] sm:$0xff]
        %v472 = vld [vmem:[#allocation3 + $0x78] sm:$0xff]
        %v473 = vld [vmem:[#allocation7] sm:$0xff]
        %v474 = vld [vmem:[#allocation7 + $0x8] sm:$0xff]
        %v475 = vld [vmem:[#allocation7 + $0x10] sm:$0xff]
        %v476 = vld [vmem:[#allocation7 + $0x18] sm:$0xff]
        %v477 = vld [vmem:[#allocation7 + $0x20] sm:$0xff]
        %v478 = vld [vmem:[#allocation7 + $0x28] sm:$0xff]
        %v479 = vld [vmem:[#allocation7 + $0x30] sm:$0xff]
        %v480 = vld [vmem:[#allocation7 + $0x38] sm:$0xff]
        %v481 = vld [vmem:[#allocation7 + $0x40] sm:$0xff]
        %v482 = vld [vmem:[#allocation7 + $0x48] sm:$0xff]
        %v483 = vld [vmem:[#allocation7 + $0x50] sm:$0xff]
        %v484 = vld [vmem:[#allocation7 + $0x58] sm:$0xff]
        %v485 = vld [vmem:[#allocation7 + $0x60] sm:$0xff]
        %v486 = vld [vmem:[#allocation7 + $0x68] sm:$0xff]
        %v487 = vld [vmem:[#allocation7 + $0x70] sm:$0xff]
        %v488 = vld [vmem:[#allocation7 + $0x78] sm:$0xff]
        %489 = vmatpush.msra.mxu0 %v456
        %490 = vmatpush.msra.mxu0 %v455
        %491 = vmatpush.msra.mxu0 %v454
        %492 = vmatpush.msra.mxu0 %v453
        %493 = vmatpush.msra.mxu0 %v452
        %494 = vmatpush.msra.mxu0 %v451
        %495 = vmatpush.msra.mxu0 %v450
        %496 = vmatpush.msra.mxu0 %v449
        %497 = vmatpush.msra.mxu0 %v448
        %498 = vmatpush.msra.mxu0 %v447
        %499 = vmatpush.msra.mxu0 %v446
        %500 = vmatpush.msra.mxu0 %v445
        %501 = vmatpush.msra.mxu0 %v444
        %502 = vmatpush.msra.mxu0 %v443
        %503 = vmatpush.msra.mxu0 %v442
        %504 = vmatpush.msra.mxu0 %v441
        %505 = vmatmul.f32.gmra.mxu0 %v473
        %v506 = vpop.f32.mrf.mxu0
        %v507 = vadd.f32 0.0, %v506
        %508 = vmatmul.f32.gmra.mxu0 %v474
        %v509 = vpop.f32.mrf.mxu0
        %v510 = vadd.f32 0.0, %v509
        %511 = vmatmul.f32.gmra.mxu0 %v475
        %v512 = vpop.f32.mrf.mxu0
        %v513 = vadd.f32 0.0, %v512
        %514 = vmatmul.f32.gmra.mxu0 %v476
        %v515 = vpop.f32.mrf.mxu0
        %v516 = vadd.f32 0.0, %v515
        %517 = vmatmul.f32.gmra.mxu0 %v477
        %v518 = vpop.f32.mrf.mxu0
        %v519 = vadd.f32 0.0, %v518
        %520 = vmatmul.f32.gmra.mxu0 %v478
        %v521 = vpop.f32.mrf.mxu0
        %v522 = vadd.f32 0.0, %v521
        %523 = vmatmul.f32.gmra.mxu0 %v479
        %v524 = vpop.f32.mrf.mxu0
        %v525 = vadd.f32 0.0, %v524
        %526 = vmatmul.f32.gmra.mxu0 %v480
        %v527 = vpop.f32.mrf.mxu0
        %v528 = vadd.f32 0.0, %v527
        %529 = vmatmul.f32.gmra.mxu0 %v481
        %v530 = vpop.f32.mrf.mxu0
        %v531 = vadd.f32 0.0, %v530
        %532 = vmatmul.f32.gmra.mxu0 %v482
        %v533 = vpop.f32.mrf.mxu0
        %v534 = vadd.f32 0.0, %v533
        %535 = vmatmul.f32.gmra.mxu0 %v483
        %v536 = vpop.f32.mrf.mxu0
        %v537 = vadd.f32 0.0, %v536
        %538 = vmatmul.f32.gmra.mxu0 %v484
        %v539 = vpop.f32.mrf.mxu0
        %v540 = vadd.f32 0.0, %v539
        %541 = vmatmul.f32.gmra.mxu0 %v485
        %v542 = vpop.f32.mrf.mxu0
        %v543 = vadd.f32 0.0, %v542
        %544 = vmatmul.f32.gmra.mxu0 %v486
        %v545 = vpop.f32.mrf.mxu0
        %v546 = vadd.f32 0.0, %v545
        %547 = vmatmul.f32.gmra.mxu0 %v487
        %v548 = vpop.f32.mrf.mxu0
        %v549 = vadd.f32 0.0, %v548
        %550 = vmatmul.f32.gmra.mxu0 %v488
        %v551 = vpop.f32.mrf.mxu0
        %v552 = vadd.f32 0.0, %v551
        %553 = vdwg.mxu0
        %v554 = vadd.f32 %v457, %v507
        %v555 = vadd.f32 %v458, %v510
        %v556 = vadd.f32 %v459, %v513
        %v557 = vadd.f32 %v460, %v516
        %v558 = vadd.f32 %v461, %v519
        %v559 = vadd.f32 %v462, %v522
        %v560 = vadd.f32 %v463, %v525
        %v561 = vadd.f32 %v464, %v528
        %v562 = vadd.f32 %v465, %v531
        %v563 = vadd.f32 %v466, %v534
        %v564 = vadd.f32 %v467, %v537
        %v565 = vadd.f32 %v468, %v540
        %v566 = vadd.f32 %v469, %v543
        %v567 = vadd.f32 %v470, %v546
        %v568 = vadd.f32 %v471, %v549
        %v569 = vadd.f32 %v472, %v552
        %570 = vst [vmem:[#allocation3] sm:$0xff] %v554
        %571 = vst [vmem:[#allocation3 + $0x8] sm:$0xff] %v555
        %572 = vst [vmem:[#allocation3 + $0x10] sm:$0xff] %v556
        %573 = vst [vmem:[#allocation3 + $0x18] sm:$0xff] %v557
        %574 = vst [vmem:[#allocation3 + $0x20] sm:$0xff] %v558
        %575 = vst [vmem:[#allocation3 + $0x28] sm:$0xff] %v559
        %576 = vst [vmem:[#allocation3 + $0x30] sm:$0xff] %v560
        %577 = vst [vmem:[#allocation3 + $0x38] sm:$0xff] %v561
        %578 = vst [vmem:[#allocation3 + $0x40] sm:$0xff] %v562
        %579 = vst [vmem:[#allocation3 + $0x48] sm:$0xff] %v563
        %580 = vst [vmem:[#allocation3 + $0x50] sm:$0xff] %v564
        %581 = vst [vmem:[#allocation3 + $0x58] sm:$0xff] %v565
        %582 = vst [vmem:[#allocation3 + $0x60] sm:$0xff] %v566
        %583 = vst [vmem:[#allocation3 + $0x68] sm:$0xff] %v567
        %584 = vst [vmem:[#allocation3 + $0x70] sm:$0xff] %v568
        %585 = vst [vmem:[#allocation3 + $0x78] sm:$0xff] %v569
        // Predicated region
        $region69: #{tpu_custom_call.1} parent=39 // pred_check
          %p586 = pneg %p369
        $region70: #{tpu_custom_call.1} parent=39 // pred_check_branch
          %588 = sbr.rel (%p586) target = $region72
        $region71: #{tpu_custom_call.1} parent=39 // pred_region
          %v589 = vld [vmem:[#allocation3] sm:$0xff]
          %v590 = vld [vmem:[#allocation3 + $0x8] sm:$0xff]
          %v591 = vld [vmem:[#allocation3 + $0x10] sm:$0xff]
          %v592 = vld [vmem:[#allocation3 + $0x18] sm:$0xff]
          %v593 = vld [vmem:[#allocation3 + $0x20] sm:$0xff]
          %v594 = vld [vmem:[#allocation3 + $0x28] sm:$0xff]
          %v595 = vld [vmem:[#allocation3 + $0x30] sm:$0xff]
          %v596 = vld [vmem:[#allocation3 + $0x38] sm:$0xff]
          %v597 = vld [vmem:[#allocation3 + $0x40] sm:$0xff]
          %v598 = vld [vmem:[#allocation3 + $0x48] sm:$0xff]
          %v599 = vld [vmem:[#allocation3 + $0x50] sm:$0xff]
          %v600 = vld [vmem:[#allocation3 + $0x58] sm:$0xff]
          %v601 = vld [vmem:[#allocation3 + $0x60] sm:$0xff]
          %v602 = vld [vmem:[#allocation3 + $0x68] sm:$0xff]
          %v603 = vld [vmem:[#allocation3 + $0x70] sm:$0xff]
          %v604 = vld [vmem:[#allocation3 + $0x78] sm:$0xff]
          %v605 = vld [vmem:[%s314] sm:$0xff]
          %v606 = vld [vmem:[%s314 + $0x8] sm:$0xff]
          %v607 = vld [vmem:[%s314 + $0x10] sm:$0xff]
          %v608 = vld [vmem:[%s314 + $0x18] sm:$0xff]
          %v609 = vld [vmem:[%s314 + $0x20] sm:$0xff]
          %v610 = vld [vmem:[%s314 + $0x28] sm:$0xff]
          %v611 = vld [vmem:[%s314 + $0x30] sm:$0xff]
          %v612 = vld [vmem:[%s314 + $0x38] sm:$0xff]
          %v613 = vld [vmem:[%s314 + $0x40] sm:$0xff]
          %v614 = vld [vmem:[%s314 + $0x48] sm:$0xff]
          %v615 = vld [vmem:[%s314 + $0x50] sm:$0xff]
          %v616 = vld [vmem:[%s314 + $0x58] sm:$0xff]
          %v617 = vld [vmem:[%s314 + $0x60] sm:$0xff]
          %v618 = vld [vmem:[%s314 + $0x68] sm:$0xff]
          %v619 = vld [vmem:[%s314 + $0x70] sm:$0xff]
          %v620 = vld [vmem:[%s314 + $0x78] sm:$0xff]
          %621 = vmatpush.msra.mxu0 %v620
          %622 = vmatpush.msra.mxu0 %v619
          %623 = vmatpush.msra.mxu0 %v618
          %624 = vmatpush.msra.mxu0 %v617
          %625 = vmatpush.msra.mxu0 %v616
          %626 = vmatpush.msra.mxu0 %v615
          %627 = vmatpush.msra.mxu0 %v614
          %628 = vmatpush.msra.mxu0 %v613
          %629 = vmatpush.msra.mxu0 %v612
          %630 = vmatpush.msra.mxu0 %v611
          %631 = vmatpush.msra.mxu0 %v610
          %632 = vmatpush.msra.mxu0 %v609
          %633 = vmatpush.msra.mxu0 %v608
          %634 = vmatpush.msra.mxu0 %v607
          %635 = vmatpush.msra.mxu0 %v606
          %636 = vmatpush.msra.mxu0 %v605
          %637 = vmatmul.f32.gmra.mxu0 %v589
          %v638 = vpop.f32.mrf.mxu0
          %v639 = vadd.f32 0.0, %v638
          %640 = vmatmul.f32.gmra.mxu0 %v590
          %v641 = vpop.f32.mrf.mxu0
          %v642 = vadd.f32 0.0, %v641
          %643 = vmatmul.f32.gmra.mxu0 %v591
          %v644 = vpop.f32.mrf.mxu0
          %v645 = vadd.f32 0.0, %v644
          %646 = vmatmul.f32.gmra.mxu0 %v592
          %v647 = vpop.f32.mrf.mxu0
          %v648 = vadd.f32 0.0, %v647
          %649 = vmatmul.f32.gmra.mxu0 %v593
          %v650 = vpop.f32.mrf.mxu0
          %v651 = vadd.f32 0.0, %v650
          %652 = vmatmul.f32.gmra.mxu0 %v594
          %v653 = vpop.f32.mrf.mxu0
          %v654 = vadd.f32 0.0, %v653
          %655 = vmatmul.f32.gmra.mxu0 %v595
          %v656 = vpop.f32.mrf.mxu0
          %v657 = vadd.f32 0.0, %v656
          %658 = vmatmul.f32.gmra.mxu0 %v596
          %v659 = vpop.f32.mrf.mxu0
          %v660 = vadd.f32 0.0, %v659
          %661 = vmatmul.f32.gmra.mxu0 %v597
          %v662 = vpop.f32.mrf.mxu0
          %v663 = vadd.f32 0.0, %v662
          %664 = vmatmul.f32.gmra.mxu0 %v598
          %v665 = vpop.f32.mrf.mxu0
          %v666 = vadd.f32 0.0, %v665
          %667 = vmatmul.f32.gmra.mxu0 %v599
          %v668 = vpop.f32.mrf.mxu0
          %v669 = vadd.f32 0.0, %v668
          %670 = vmatmul.f32.gmra.mxu0 %v600
          %v671 = vpop.f32.mrf.mxu0
          %v672 = vadd.f32 0.0, %v671
          %673 = vmatmul.f32.gmra.mxu0 %v601
          %v674 = vpop.f32.mrf.mxu0
          %v675 = vadd.f32 0.0, %v674
          %676 = vmatmul.f32.gmra.mxu0 %v602
          %v677 = vpop.f32.mrf.mxu0
          %v678 = vadd.f32 0.0, %v677
          %679 = vmatmul.f32.gmra.mxu0 %v603
          %v680 = vpop.f32.mrf.mxu0
          %v681 = vadd.f32 0.0, %v680
          %682 = vmatmul.f32.gmra.mxu0 %v604
          %v683 = vpop.f32.mrf.mxu0
          %v684 = vadd.f32 0.0, %v683
          %685 = vdwg.mxu0
          %v686 = vld [vmem:[%s323] sm:$0x1]
          %v688 = vperm.slane %v686, 0
          %v690 = vmul.f32 %v639, %v688
          %v691 = vmul.f32 %v642, %v688
          %v692 = vmul.f32 %v645, %v688
          %v693 = vmul.f32 %v648, %v688
          %v694 = vmul.f32 %v651, %v688
          %v695 = vmul.f32 %v654, %v688
          %v696 = vmul.f32 %v657, %v688
          %v697 = vmul.f32 %v660, %v688
          %v698 = vmul.f32 %v663, %v688
          %v699 = vmul.f32 %v666, %v688
          %v700 = vmul.f32 %v669, %v688
          %v701 = vmul.f32 %v672, %v688
          %v702 = vmul.f32 %v675, %v688
          %v703 = vmul.f32 %v678, %v688
          %v704 = vmul.f32 %v681, %v688
          %v705 = vmul.f32 %v684, %v688
          %v706 = vld [vmem:[%s332] sm:$0x1]
          %v708 = vperm.slane %v706, 0
          %v710 = vadd.f32 %v690, %v708
          %v711 = vadd.f32 %v691, %v708
          %v712 = vadd.f32 %v692, %v708
          %v713 = vadd.f32 %v693, %v708
          %v714 = vadd.f32 %v694, %v708
          %v715 = vadd.f32 %v695, %v708
          %v716 = vadd.f32 %v696, %v708
          %v717 = vadd.f32 %v697, %v708
          %v718 = vadd.f32 %v698, %v708
          %v719 = vadd.f32 %v699, %v708
          %v720 = vadd.f32 %v700, %v708
          %v721 = vadd.f32 %v701, %v708
          %v722 = vadd.f32 %v702, %v708
          %v723 = vadd.f32 %v703, %v708
          %v724 = vadd.f32 %v704, %v708
          %v725 = vadd.f32 %v705, %v708
          %p726 = scmp.lt.s32.totalorder %s24, 3
          %s727 = scalar_select %p726, 0.0, -inf
          %v728 = vstv %s727
          %v729 = vmax.f32 %v710, %v728
          %v730 = vmax.f32 %v711, %v728
          %v731 = vmax.f32 %v712, %v728
          %v732 = vmax.f32 %v713, %v728
          %v733 = vmax.f32 %v714, %v728
          %v734 = vmax.f32 %v715, %v728
          %v735 = vmax.f32 %v716, %v728
          %v736 = vmax.f32 %v717, %v728
          %v737 = vmax.f32 %v718, %v728
          %v738 = vmax.f32 %v719, %v728
          %v739 = vmax.f32 %v720, %v728
          %v740 = vmax.f32 %v721, %v728
          %v741 = vmax.f32 %v722, %v728
          %v742 = vmax.f32 %v723, %v728
          %v743 = vmax.f32 %v724, %v728
          %v744 = vmax.f32 %v725, %v728
          %s745 = sadd.s32 %s24, 1
          %p746 = scmp.lt.s32.totalorder %s745, 0
          %s747 = ssub.s32 0, %s745
          %s748 = scalar_select %p746, %s747, %s745
          %s749 = sand.u32 %s748, 1
          %s750 = ssub.s32 0, %s749
          %s751 = scalar_select %p746, %s750, %s749
          %p752 = scmp.ne.s32.totalorder %s751, 0
          %p753 = scmp.lt.s32.totalorder %s751, 0
          %p754 = pnand %p753, %p752
          %p755 = pneg %p754
          %s756 = sadd.s32 %s751, 2
          %s757 = scalar_select %p755, %s756, %s751
          %s758 = smul.u32 %s757, 128
          %s759 = smul.u32 %s25, 128
          %s760 = sadd.s32 %s758, %s759
          %s761 = scalar_lea.vmem [#allocation2], %s760
          %762 = vst [vmem:[%s761] sm:$0xff] %v729
          %763 = vst [vmem:[%s761 + $0x8] sm:$0xff] %v730
          %764 = vst [vmem:[%s761 + $0x10] sm:$0xff] %v731
          %765 = vst [vmem:[%s761 + $0x18] sm:$0xff] %v732
          %766 = vst [vmem:[%s761 + $0x20] sm:$0xff] %v733
          %767 = vst [vmem:[%s761 + $0x28] sm:$0xff] %v734
          %768 = vst [vmem:[%s761 + $0x30] sm:$0xff] %v735
          %769 = vst [vmem:[%s761 + $0x38] sm:$0xff] %v736
          %770 = vst [vmem:[%s761 + $0x40] sm:$0xff] %v737
          %771 = vst [vmem:[%s761 + $0x48] sm:$0xff] %v738
          %772 = vst [vmem:[%s761 + $0x50] sm:$0xff] %v739
          %773 = vst [vmem:[%s761 + $0x58] sm:$0xff] %v740
          %774 = vst [vmem:[%s761 + $0x60] sm:$0xff] %v741
          %775 = vst [vmem:[%s761 + $0x68] sm:$0xff] %v742
          %776 = vst [vmem:[%s761 + $0x70] sm:$0xff] %v743
          %777 = vst [vmem:[%s761 + $0x78] sm:$0xff] %v744
          %778 = vst [vmem:[#allocation12] sm:$0xff] %v729
          %779 = vst [vmem:[#allocation12 + $0x8] sm:$0xff] %v730
          %780 = vst [vmem:[#allocation12 + $0x10] sm:$0xff] %v731
          %781 = vst [vmem:[#allocation12 + $0x18] sm:$0xff] %v732
          %782 = vst [vmem:[#allocation12 + $0x20] sm:$0xff] %v733
          %783 = vst [vmem:[#allocation12 + $0x28] sm:$0xff] %v734
          %784 = vst [vmem:[#allocation12 + $0x30] sm:$0xff] %v735
          %785 = vst [vmem:[#allocation12 + $0x38] sm:$0xff] %v736
          %786 = vst [vmem:[#allocation12 + $0x40] sm:$0xff] %v737
          %787 = vst [vmem:[#allocation12 + $0x48] sm:$0xff] %v738
          %788 = vst [vmem:[#allocation12 + $0x50] sm:$0xff] %v739
          %789 = vst [vmem:[#allocation12 + $0x58] sm:$0xff] %v740
          %790 = vst [vmem:[#allocation12 + $0x60] sm:$0xff] %v741
          %791 = vst [vmem:[#allocation12 + $0x68] sm:$0xff] %v742
          %792 = vst [vmem:[#allocation12 + $0x70] sm:$0xff] %v743
          %793 = vst [vmem:[#allocation12 + $0x78] sm:$0xff] %v744
        $region72: #{tpu_custom_call.1} parent=39 // pred_fallthru
          _
        // Predicated region
        $region73: #{tpu_custom_call.1} parent=39 // pred_check
          %p794 = pneg %p183
        $region74: #{tpu_custom_call.1} parent=39 // pred_check_branch
          %796 = sbr.rel (%p794) target = $region76
        $region75: #{tpu_custom_call.1} parent=39 // pred_region
          %s797 = smul.u32 16, %s25
          %799 = vsyncadd [#allocation6], 0
          %s800 = smul.addr %s797, 8
          %s801 = scalar_lea.hbm %s5, %s800
          %s802 = sshll.u32 [#allocation12], 4
          %s803 = int_to_ptr.vmem [resolvable:$true] %s802
          %s804 = sshll.u32 %s801, 4
          %s805 = int_to_ptr.hbm [resolvable:$true] %s804
          %810 = dma.vmem_to_hbm [thread:$0]  %s803, 2048, %s805, [#allocation6], 128, 128, 8
        $region76: #{tpu_custom_call.1} parent=39 // pred_fallthru
          _
        // Predicated region
        $region77: #{tpu_custom_call.1} parent=39 // pred_check
          %p811 = pneg %p183
        $region78: #{tpu_custom_call.1} parent=39 // pred_check_branch
          %813 = sbr.rel (%p811) target = $region80
        $region79: #{tpu_custom_call.1} parent=39 // pred_region
          %815 = dma.done [#allocation6], 2048
        $region80: #{tpu_custom_call.1} parent=39 // pred_fallthru
          _
      $region40: #{tpu_custom_call.1} parent=5 // pred_fallthru
        _
      %p816 = scmp.le.s32.totalorder 2, %s14
      // Predicated region
      $region81: #{tpu_custom_call.1} parent=5 // pred_check
        %p817 = pneg %p816
      $region82: #{tpu_custom_call.1} parent=5 // pred_check_branch
        %819 = sbr.rel (%p817) target = $region84
      $region83: #{tpu_custom_call.1} parent=5 // pred_region
        %s820 = ssub.s32 %s14, 2
      $region84: #{tpu_custom_call.1} parent=5 // pred_fallthru
        _
    $region6: #{tpu_custom_call.1} parent=1 // loop_footer
      %s18 = sadd.s32 1, %s14
    $region7: #{tpu_custom_call.1} parent=1 // loop_footer_branch
      %13 = sbr.rel target = $region3
    $region8: #{tpu_custom_call.1} parent=1 // loop_exit
      _
    %821 = vsyncpa [#allocation5], 1
    %s822 = scalar_lea.sflag [#allocation5], 1
    %823 = vsyncpa %s822, 1
    %824 = vsyncpa [#allocation8], 1
    %825 = vsyncpa [#allocation6], 1
    %s826 = scalar_lea.sflag [#allocation6], 1
    %827 = vsyncpa %s826, 1

</llo_original>
